<compile_context>
chip_gen: v5e
topology: v5e:2x2
jax: 0.10.0
libtpu: 0.0.40
codegen_flags: <defaults>
</compile_context>

<pallas_src>
import jax
import jax.numpy as jnp
from jax.experimental import pallas as pl
from jax.experimental.pallas import tpu as pltpu

C_IN, C_MID, C_OUT = 64, 8, 4


def _fused_kernel(x_ref, w1_ref, b1_ref, w2_ref, b2_ref, o_ref):
    # x_ref:  (C_IN, tm)   one batch element, tm spatial pixels on lanes
    # w1_ref: (C_MID, C_IN), b1_ref: (C_MID, 1)
    # w2_ref: (C_OUT, C_MID), b2_ref: (C_OUT, 1)
    # o_ref:  (C_OUT, tm)
    v1 = jnp.dot(w1_ref[...], x_ref[...],
                 preferred_element_type=jnp.float32) + b1_ref[...]
    v6 = v1 * (v1 + 1.0)
    v7 = jnp.dot(w2_ref[...], v6,
                 preferred_element_type=jnp.float32) + b2_ref[...]
    o_ref[...] = v7.astype(o_ref.dtype)


def _cdiv(a, b):
    return -(-a // b)


def _pick_tiling(n, hw, tm_max):
    """Return (tm, n_spatial).

    Full-extent spatial tile when it fits the cap; otherwise balanced tiles
    that are multiples of 128.  If the whole kernel would collapse to a
    single grid point (N==1, one spatial tile), split spatially so both
    TensorCores on v7x get work.
    """
    tm_max = max(128, (tm_max // 128) * 128)

    if hw <= tm_max:
        tm = hw                       # full-extent last dim: always legal
    else:
        n_tiles = _cdiv(hw, tm_max)
        per = _cdiv(hw, n_tiles)      # balanced per-tile width
        tm = 128 * _cdiv(per, 128)    # round up to a lane multiple (<= tm_max)

    n_spatial = _cdiv(hw, tm)

    # Megacore: guarantee >= 2 grid points along the parallel axes.
    if n * n_spatial < 2 and hw > 128:
        half = _cdiv(hw, 2)
        tm = 128 * _cdiv(half, 128)
        n_spatial = _cdiv(hw, tm)

    return tm, n_spatial


def fused_forward(x_nchw, w1, b1, w2, b2, *, tm_max=8192):
    """x_nchw: (N, 64, H, W) float32 -> (N, 4, H, W) float32."""
    N, C, H, W = x_nchw.shape
    assert C == C_IN
    HW = H * W

    # Metadata-only reshapes (no HBM passes): keep NCHW, flatten spatial.
    x3d = x_nchw.reshape(N, C_IN, HW)

    # Conv weights (C_out, C_in, 1, 1) -> (C_out, C_in); biases -> (C_out, 1).
    w1m = w1.reshape(C_MID, C_IN)
    w2m = w2.reshape(C_OUT, C_MID)
    b1m = b1.reshape(C_MID, 1)
    b2m = b2.reshape(C_OUT, 1)

    tm, n_spatial = _pick_tiling(N, HW, tm_max)
    # Tail block (if tm does not divide HW) is handled by Pallas OOB masking;
    # there is no spatial reduction, so padded columns never contaminate
    # real outputs.

    itemsize = 4
    cost = pl.CostEstimate(
        flops=2 * N * HW * (C_IN * C_MID + C_MID * C_OUT),
        transcendentals=0,
        bytes_accessed=N * HW * (C_IN + C_OUT) * itemsize
        + (C_MID * C_IN + C_OUT * C_MID + C_MID + C_OUT) * itemsize,
    )

    out3d = pl.pallas_call(
        _fused_kernel,
        out_shape=jax.ShapeDtypeStruct((N, C_OUT, HW), x3d.dtype),
        grid_spec=pltpu.PrefetchScalarGridSpec(
            num_scalar_prefetch=0,
            grid=(N, n_spatial),
            in_specs=[
                # (None, ...) squeezes the batch dim -> kernel sees (C_IN, tm)
                pl.BlockSpec((None, C_IN, tm), lambda n, s: (n, 0, s)),
                pl.BlockSpec((C_MID, C_IN), lambda n, s: (0, 0)),
                pl.BlockSpec((C_MID, 1), lambda n, s: (0, 0)),
                pl.BlockSpec((C_OUT, C_MID), lambda n, s: (0, 0)),
                pl.BlockSpec((C_OUT, 1), lambda n, s: (0, 0)),
            ],
            out_specs=pl.BlockSpec((None, C_OUT, tm), lambda n, s: (n, 0, s)),
        ),
        compiler_params=pltpu.CompilerParams(
            dimension_semantics=("parallel", "parallel")),
        cost_estimate=cost,
    )(x3d, w1m, b1m, w2m, b2m)

    return out3d.reshape(N, C_OUT, H, W)


def _ref_forward(x_nchw, w1, b1, w2, b2):
    # Pure-JAX reference (1x1 convs as einsum over channels).
    v1 = jnp.einsum("nchw,oc->nohw", x_nchw, w1.reshape(C_MID, C_IN)) \
        + b1.reshape(1, C_MID, 1, 1)
    v6 = v1 * (v1 + 1.0)
    v7 = jnp.einsum("nchw,oc->nohw", v6, w2.reshape(C_OUT, C_MID)) \
        + b2.reshape(1, C_OUT, 1, 1)
    return v7


if __name__ == "__main__":
    key = jax.random.PRNGKey(0)
    k_x, k_w1, k_b1, k_w2, k_b2 = jax.random.split(key, 5)

    # Deterministic conv parameter init (PyTorch-style uniform bounds).
    bound1 = 1.0 / (C_IN ** 0.5)
    w1 = jax.random.uniform(k_w1, (C_MID, C_IN, 1, 1), jnp.float32, -bound1, bound1)
    b1 = jax.random.uniform(k_b1, (C_MID,), jnp.float32, -bound1, bound1)
    bound2 = 1.0 / (C_MID ** 0.5)
    w2 = jax.random.uniform(k_w2, (C_OUT, C_MID, 1, 1), jnp.float32, -bound2, bound2)
    b2 = jax.random.uniform(k_b2, (C_OUT,), jnp.float32, -bound2, bound2)

    # Small primary test (channels fixed 64 -> 8 -> 4, reduced spatial).
    N, H, W = 2, 16, 16
    x = jax.random.normal(k_x, (N, C_IN, H, W), dtype=jnp.float32)
    out = jax.block_until_ready(fused_forward(x, w1, b1, w2, b2))
    ref = _ref_forward(x, w1, b1, w2, b2)
    assert out.shape == (N, C_OUT, H, W)
    assert jnp.allclose(out, ref, atol=1e-4, rtol=1e-4)

    # Spec-shaped check (1, 64, 56, 56): exercises full-extent tile +
    # megacore spatial split (N == 1).
    x_spec = jax.random.normal(jax.random.PRNGKey(1), (1, C_IN, 56, 56),
                               dtype=jnp.float32)
    out_spec = jax.block_until_ready(fused_forward(x_spec, w1, b1, w2, b2))
    ref_spec = _ref_forward(x_spec, w1, b1, w2, b2)
    assert out_spec.shape == (1, C_OUT, 56, 56)
    assert jnp.allclose(out_spec, ref_spec, atol=1e-4, rtol=1e-4)

    print("KERNEL_OK")
</pallas_src>

<mosaic_0001>
module attributes {stable_mosaic.version = 11 : i64} {
  func.func @_fused_kernel(%arg0: i32, %arg1: i32, %arg2: memref<1x64x256xf32, #tpu.memory_space<vmem>>, %arg3: memref<8x64xf32, #tpu.memory_space<vmem>>, %arg4: memref<8x1xf32, #tpu.memory_space<vmem>>, %arg5: memref<4x8xf32, #tpu.memory_space<vmem>>, %arg6: memref<4x1xf32, #tpu.memory_space<vmem>>, %arg7: memref<1x4x256xf32, #tpu.memory_space<vmem>>) attributes {dimension_semantics = [#tpu.dimension_semantics<parallel>, #tpu.dimension_semantics<parallel>], iteration_bounds = array<i64: 2, 1>, scalar_prefetch = 0 : i64, scratch_operands = 0 : i64, tpu.core_type = #tpu.core_type<tc>, window_params = [{transform_indices = @transform_0, window_bounds = array<i64: 1, 64, 256>}, {pipeline_mode = #tpu.pipeline_mode<synchronous>, transform_indices = @transform_1, window_bounds = array<i64: 8, 64>}, {pipeline_mode = #tpu.pipeline_mode<synchronous>, transform_indices = @transform_2, window_bounds = array<i64: 8, 1>}, {pipeline_mode = #tpu.pipeline_mode<synchronous>, transform_indices = @transform_3, window_bounds = array<i64: 4, 8>}, {pipeline_mode = #tpu.pipeline_mode<synchronous>, transform_indices = @transform_4, window_bounds = array<i64: 4, 1>}, {transform_indices = @transform_5, window_bounds = array<i64: 1, 4, 256>}]} {
    %c0 = arith.constant 0 : index
    %c0_0 = arith.constant 0 : index
    %0 = vector.load %arg3[%c0, %c0_0] : memref<8x64xf32, #tpu.memory_space<vmem>>, vector<8x64xf32>
    %c0_1 = arith.constant 0 : index
    %c0_2 = arith.constant 0 : index
    %c0_3 = arith.constant 0 : index
    %1 = vector.load %arg2[%c0_1, %c0_2, %c0_3] : memref<1x64x256xf32, #tpu.memory_space<vmem>>, vector<1x64x256xf32>
    %2 = vector.shape_cast %1 : vector<1x64x256xf32> to vector<64x256xf32>
    %cst = arith.constant dense<0.000000e+00> : vector<8x256xf32>
    %3 = tpu.matmul %0, %2, %cst {dimension_numbers = #tpu.dot_dimension_numbers<[1], [0], [0], [1], [0, 0, 1, 1], [], []>} : vector<8x64xf32>, vector<64x256xf32>, vector<8x256xf32> -> vector<8x256xf32>
    %c0_4 = arith.constant 0 : index
    %c0_5 = arith.constant 0 : index
    %4 = vector.load %arg4[%c0_4, %c0_5] : memref<8x1xf32, #tpu.memory_space<vmem>>, vector<8x1xf32>
    %5 = vector.broadcast %4 : vector<8x1xf32> to vector<8x256xf32>
    %6 = arith.addf %3, %5 : vector<8x256xf32>
    %cst_6 = arith.constant 1.000000e+00 : f32
    %7 = vector.broadcast %cst_6 : f32 to vector<8x256xf32>
    %8 = arith.addf %6, %7 : vector<8x256xf32>
    %9 = arith.mulf %6, %8 : vector<8x256xf32>
    %c0_7 = arith.constant 0 : index
    %c0_8 = arith.constant 0 : index
    %10 = vector.load %arg5[%c0_7, %c0_8] : memref<4x8xf32, #tpu.memory_space<vmem>>, vector<4x8xf32>
    %cst_9 = arith.constant dense<0.000000e+00> : vector<4x256xf32>
    %11 = tpu.matmul %10, %9, %cst_9 {dimension_numbers = #tpu.dot_dimension_numbers<[1], [0], [0], [1], [0, 0, 1, 1], [], []>} : vector<4x8xf32>, vector<8x256xf32>, vector<4x256xf32> -> vector<4x256xf32>
    %c0_10 = arith.constant 0 : index
    %c0_11 = arith.constant 0 : index
    %12 = vector.load %arg6[%c0_10, %c0_11] : memref<4x1xf32, #tpu.memory_space<vmem>>, vector<4x1xf32>
    %13 = vector.broadcast %12 : vector<4x1xf32> to vector<4x256xf32>
    %14 = arith.addf %11, %13 : vector<4x256xf32>
    %c0_12 = arith.constant 0 : index
    %c0_13 = arith.constant 0 : index
    %c0_14 = arith.constant 0 : index
    %15 = vector.load %arg7[%c0_12, %c0_13, %c0_14] : memref<1x4x256xf32, #tpu.memory_space<vmem>>, vector<1x4x256xf32>
    %16 = vector.shape_cast %15 : vector<1x4x256xf32> to vector<4x256xf32>
    %17 = vector.shape_cast %14 : vector<4x256xf32> to vector<1x4x256xf32>
    tpu.vector_store %arg7[%c0_12, %c0_13, %c0_14], %17 {strides = array<i32>} : memref<1x4x256xf32, #tpu.memory_space<vmem>>, vector<1x4x256xf32>,
    return
  }
  func.func @transform_0(%arg0: i32, %arg1: i32) -> (i32, i32, i32) {
    %c0_i32 = arith.constant 0 : i32
    %c0_i32_0 = arith.constant 0 : i32
    return %arg0, %c0_i32, %arg1 : i32, i32, i32
  }
  func.func @transform_1(%arg0: i32, %arg1: i32) -> (i32, i32) {
    %c0_i32 = arith.constant 0 : i32
    %c0_i32_0 = arith.constant 0 : i32
    %c0_i32_1 = arith.constant 0 : i32
    return %c0_i32, %c0_i32_0 : i32, i32
  }
  func.func @transform_2(%arg0: i32, %arg1: i32) -> (i32, i32) {
    %c0_i32 = arith.constant 0 : i32
    %c0_i32_0 = arith.constant 0 : i32
    %c0_i32_1 = arith.constant 0 : i32
    return %c0_i32, %c0_i32_0 : i32, i32
  }
  func.func @transform_3(%arg0: i32, %arg1: i32) -> (i32, i32) {
    %c0_i32 = arith.constant 0 : i32
    %c0_i32_0 = arith.constant 0 : i32
    %c0_i32_1 = arith.constant 0 : i32
    return %c0_i32, %c0_i32_0 : i32, i32
  }
  func.func @transform_4(%arg0: i32, %arg1: i32) -> (i32, i32) {
    %c0_i32 = arith.constant 0 : i32
    %c0_i32_0 = arith.constant 0 : i32
    %c0_i32_1 = arith.constant 0 : i32
    return %c0_i32, %c0_i32_0 : i32, i32
  }
  func.func @transform_5(%arg0: i32, %arg1: i32) -> (i32, i32, i32) {
    %c0_i32 = arith.constant 0 : i32
    %c0_i32_0 = arith.constant 0 : i32
    return %arg0, %c0_i32, %arg1 : i32, i32, i32
  }
}

</mosaic_0001>

<llo_original>
// kernel: tpu_custom_call.1
$region0: #{tpu_custom_call.1}
  #allocation0 [shape = 'u32[]', space=smem, size = 0x4, offset = 0x4, fixed_abs, tag = 'smem constant byte address 0x4 - core index']
  #allocation1 [shape = 'u32[72,128]{1,0:T(1,128)}', space=vmem, size = 0x9000, scoped, tag = 'internal scratch']
  %s0 = inlined_call_operand.hbm [shape: f32[2,64,256], index: 0, kind: input, shape index: {}]
  %s1 = inlined_call_operand.vmem [shape: f32[8,64], index: 1, kind: input, shape index: {}]
  %s2 = inlined_call_operand.vmem [shape: f32[8,1], index: 2, kind: input, shape index: {}]
  %s3 = inlined_call_operand.vmem [shape: f32[4,8], index: 3, kind: input, shape index: {}]
  %s4 = inlined_call_operand.vmem [shape: f32[4,1], index: 4, kind: input, shape index: {}]
  %s5 = inlined_call_operand.hbm [shape: f32[2,4,256], index: 5, kind: output, shape index: {}]
  %s6 = sld [smem:[#allocation0]]
  $region57: #{tpu_custom_call.1} parent=0
    _
  %s8 = ssub.s32 1, %s6
  %s9 = scalar_select 0, %s8, %s6
  $region1: #{tpu_custom_call.1} parent=0
    #allocation2 [shape = 'u8[131072]{0}', space=vmem, size = 0x20000, scoped, tag = 'input window, operand 0']
    #allocation3 [shape = 's32[2]{0}', space=sflag, size = 0x8, scoped, tag = 'scoped memory for tpu_custom_call.1']
    #allocation4 [shape = 's32[2]{0}', space=sflag, size = 0x8, scoped, tag = 'scoped memory for tpu_custom_call.1']
    #allocation5 [shape = 'u8[8192]{0}', space=vmem, size = 0x2000, scoped, tag = 'output window, operand 0']
    %10 = vsyncpa [#allocation3], 0
    %s11 = scalar_lea.sflag [#allocation3], 1
    %12 = vsyncpa %s11, 0
    %13 = vsyncpa [#allocation4], 0
    %s14 = scalar_lea.sflag [#allocation4], 1
    %15 = vsyncpa %s14, 0
    loop: start=0, step=1, limit=4
    $region2: #{tpu_custom_call.1} parent=1 // loop_pre_header
      _
    $region3: #{tpu_custom_call.1} parent=1 // loop_header
      %s17 = sphi 0, %s21
      %p18 = scmp.ge.s32.totalorder %s17, 4
      %s24 = sphi 0, %s36
      %s25 = sphi 0, %s32
      %s26 = sphi 0, %s24
      %s27 = sphi 0, %s25
      %s28 = sphi 0, %s26
      %s29 = sphi 0, %s27
      %s41 = sphi 0, %s43
      %s44 = sphi 0, %s41
      %s45 = sphi 0, %s44
      %s61 = sphi 0, %s45
      %s65 = sphi 0, %s65
      %s67 = sphi 0, %s65
      %s68 = sphi 0, %s67
      %s82 = sphi 0, %s68
      %s86 = sphi 0, %s86
      %s88 = sphi 0, %s86
      %s89 = sphi 0, %s88
      %s103 = sphi 0, %s89
      %s107 = sphi 0, %s107
      %s109 = sphi 0, %s107
      %s110 = sphi 0, %s109
      %s124 = sphi 0, %s110
      %s128 = sphi 0, %s128
      %s130 = sphi 0, %s128
      %s131 = sphi 0, %s130
      %s145 = sphi 0, %s131
      %s153 = sphi 0, %s155
      %s156 = sphi 0, %s153
      %s157 = sphi 0, %s156
      %s173 = sphi 0, %s157
    $region4: #{tpu_custom_call.1} parent=1 // loop_header_branch
      %20 = sbr.rel (%p18) target = $region8
    $region5: #{tpu_custom_call.1} parent=1 // loop_body
      %s22 = ssub.s32 %s17, 1
      %s23 = ssub.s32 %s17, 2
      %s30 = sadd.s32 1, %s25
      %p31 = scmp.ge.s32.totalorder %s30, 1
      %s32 = scalar_select %p31, 0, %s30
      %s33 = sadd.s32 1, %s24
      %s34 = scalar_select %p31, %s33, %s24
      %p35 = scmp.ge.s32.totalorder %s34, 2
      %s36 = scalar_select %p35, 0, %s34
      %s37 = ssub.s32 %s24, %s36
      %s38 = ssub.s32 %s25, %s32
      %s39 = sor.u32 %s37, %s38
      %p40 = scmp.eq.s32.totalorder %s39, 0
      %s42 = sadd.s32 %s41, 1
      %s43 = scalar_select %p40, %s41, %s42
      %p46 = pneg %p40
      %p47 = scmp.eq.s32.totalorder %s17, 1
      %p48 = por %p46, %p47
      %p49 = scmp.ne.s32.totalorder %s41, %s44
      %p50 = scmp.eq.s32.totalorder %s17, 0
      %p51 = por %p49, %p50
      %p52 = scmp.ne.s32.totalorder %s41, %s44
      %p53 = scmp.eq.s32.totalorder %s22, 1
      %p54 = por %p52, %p53
      %p55 = scmp.ne.s32.totalorder %s44, %s45
      %p56 = scmp.eq.s32.totalorder %s22, 0
      %p57 = por %p55, %p56
      %p58 = scmp.ne.s32.totalorder %s44, %s45
      %p59 = scmp.eq.s32.totalorder %s23, 1
      %p60 = por %p58, %p59
      %p62 = scmp.ne.s32.totalorder %s45, %s61
      %p63 = scmp.eq.s32.totalorder %s23, 0
      %p64 = por %p62, %p63
      %s66 = sadd.s32 %s65, 1
      %p69 = scmp.eq.s32.totalorder %s17, 1
      %p70 = scmp.ne.s32.totalorder %s65, %s67
      %p71 = scmp.eq.s32.totalorder %s17, 0
      %p72 = por %p70, %p71
      %p73 = scmp.ne.s32.totalorder %s65, %s67
      %p74 = scmp.eq.s32.totalorder %s22, 1
      %p75 = por %p73, %p74
      %p76 = scmp.ne.s32.totalorder %s67, %s68
      %p77 = scmp.eq.s32.totalorder %s22, 0
      %p78 = por %p76, %p77
      %p79 = scmp.ne.s32.totalorder %s67, %s68
      %p80 = scmp.eq.s32.totalorder %s23, 1
      %p81 = por %p79, %p80
      %p83 = scmp.ne.s32.totalorder %s68, %s82
      %p84 = scmp.eq.s32.totalorder %s23, 0
      %p85 = por %p83, %p84
      %s87 = sadd.s32 %s86, 1
      %p90 = scmp.eq.s32.totalorder %s17, 1
      %p91 = scmp.ne.s32.totalorder %s86, %s88
      %p92 = scmp.eq.s32.totalorder %s17, 0
      %p93 = por %p91, %p92
      %p94 = scmp.ne.s32.totalorder %s86, %s88
      %p95 = scmp.eq.s32.totalorder %s22, 1
      %p96 = por %p94, %p95
      %p97 = scmp.ne.s32.totalorder %s88, %s89
      %p98 = scmp.eq.s32.totalorder %s22, 0
      %p99 = por %p97, %p98
      %p100 = scmp.ne.s32.totalorder %s88, %s89
      %p101 = scmp.eq.s32.totalorder %s23, 1
      %p102 = por %p100, %p101
      %p104 = scmp.ne.s32.totalorder %s89, %s103
      %p105 = scmp.eq.s32.totalorder %s23, 0
      %p106 = por %p104, %p105
      %s108 = sadd.s32 %s107, 1
      %p111 = scmp.eq.s32.totalorder %s17, 1
      %p112 = scmp.ne.s32.totalorder %s107, %s109
      %p113 = scmp.eq.s32.totalorder %s17, 0
      %p114 = por %p112, %p113
      %p115 = scmp.ne.s32.totalorder %s107, %s109
      %p116 = scmp.eq.s32.totalorder %s22, 1
      %p117 = por %p115, %p116
      %p118 = scmp.ne.s32.totalorder %s109, %s110
      %p119 = scmp.eq.s32.totalorder %s22, 0
      %p120 = por %p118, %p119
      %p121 = scmp.ne.s32.totalorder %s109, %s110
      %p122 = scmp.eq.s32.totalorder %s23, 1
      %p123 = por %p121, %p122
      %p125 = scmp.ne.s32.totalorder %s110, %s124
      %p126 = scmp.eq.s32.totalorder %s23, 0
      %p127 = por %p125, %p126
      %s129 = sadd.s32 %s128, 1
      %p132 = scmp.eq.s32.totalorder %s17, 1
      %p133 = scmp.ne.s32.totalorder %s128, %s130
      %p134 = scmp.eq.s32.totalorder %s17, 0
      %p135 = por %p133, %p134
      %p136 = scmp.ne.s32.totalorder %s128, %s130
      %p137 = scmp.eq.s32.totalorder %s22, 1
      %p138 = por %p136, %p137
      %p139 = scmp.ne.s32.totalorder %s130, %s131
      %p140 = scmp.eq.s32.totalorder %s22, 0
      %p141 = por %p139, %p140
      %p142 = scmp.ne.s32.totalorder %s130, %s131
      %p143 = scmp.eq.s32.totalorder %s23, 1
      %p144 = por %p142, %p143
      %p146 = scmp.ne.s32.totalorder %s131, %s145
      %p147 = scmp.eq.s32.totalorder %s23, 0
      %p148 = por %p146, %p147
      %s149 = ssub.s32 %s24, %s36
      %s150 = ssub.s32 %s25, %s32
      %s151 = sor.u32 %s149, %s150
      %p152 = scmp.eq.s32.totalorder %s151, 0
      %s154 = sadd.s32 %s153, 1
      %s155 = scalar_select %p152, %s153, %s154
      %p158 = pneg %p152
      %p159 = scmp.eq.s32.totalorder %s17, 1
      %p160 = por %p158, %p159
      %p161 = scmp.ne.s32.totalorder %s153, %s156
      %p162 = scmp.eq.s32.totalorder %s17, 0
      %p163 = por %p161, %p162
      %p164 = scmp.ne.s32.totalorder %s153, %s156
      %p165 = scmp.eq.s32.totalorder %s22, 1
      %p166 = por %p164, %p165
      %p167 = scmp.ne.s32.totalorder %s156, %s157
      %p168 = scmp.eq.s32.totalorder %s22, 0
      %p169 = por %p167, %p168
      %p170 = scmp.ne.s32.totalorder %s156, %s157
      %p171 = scmp.eq.s32.totalorder %s23, 1
      %p172 = por %p170, %p171
      %p174 = scmp.ne.s32.totalorder %s157, %s173
      %p175 = scmp.eq.s32.totalorder %s23, 0
      %p176 = por %p174, %p175
      %p177 = scmp.le.s32.totalorder 1, %s17
      %p178 = scmp.lt.s32.totalorder %s17, 3
      %p179 = pnand %p177, %p178
      %p180 = pneg %p179
      // Predicated region
      $region9: #{tpu_custom_call.1} parent=5 // pred_check
        _
      $region10: #{tpu_custom_call.1} parent=5 // pred_check_branch
        %182 = sbr.rel (%p179) target = $region12
      $region11: #{tpu_custom_call.1} parent=5 // pred_region
        %s183 = ssub.s32 %s17, 1
        // Predicated region
        $region13: #{tpu_custom_call.1} parent=11 // pred_check
          %p184 = pneg %p78
        $region14: #{tpu_custom_call.1} parent=11 // pred_check_branch
          %186 = sbr.rel (%p184) target = $region16
        $region15: #{tpu_custom_call.1} parent=11 // pred_region
          _
        $region16: #{tpu_custom_call.1} parent=11 // pred_fallthru
          _
        // Predicated region
        $region17: #{tpu_custom_call.1} parent=11 // pred_check
          %p187 = pneg %p99
        $region18: #{tpu_custom_call.1} parent=11 // pred_check_branch
          %189 = sbr.rel (%p187) target = $region20
        $region19: #{tpu_custom_call.1} parent=11 // pred_region
          _
        $region20: #{tpu_custom_call.1} parent=11 // pred_fallthru
          _
        // Predicated region
        $region21: #{tpu_custom_call.1} parent=11 // pred_check
          %p190 = pneg %p120
        $region22: #{tpu_custom_call.1} parent=11 // pred_check_branch
          %192 = sbr.rel (%p190) target = $region24
        $region23: #{tpu_custom_call.1} parent=11 // pred_region
          _
        $region24: #{tpu_custom_call.1} parent=11 // pred_fallthru
          _
        // Predicated region
        $region25: #{tpu_custom_call.1} parent=11 // pred_check
          %p193 = pneg %p141
        $region26: #{tpu_custom_call.1} parent=11 // pred_check_branch
          %195 = sbr.rel (%p193) target = $region28
        $region27: #{tpu_custom_call.1} parent=11 // pred_region
          _
        $region28: #{tpu_custom_call.1} parent=11 // pred_fallthru
          _
      $region12: #{tpu_custom_call.1} parent=5 // pred_fallthru
        _
      %p196 = scmp.lt.s32.totalorder %s17, 2
      // Predicated region
      $region29: #{tpu_custom_call.1} parent=5 // pred_check
        %p197 = pneg %p196
      $region30: #{tpu_custom_call.1} parent=5 // pred_check_branch
        %199 = sbr.rel (%p197) target = $region32
      $region31: #{tpu_custom_call.1} parent=5 // pred_region
        // Predicated region
        $region33: #{tpu_custom_call.1} parent=31 // pred_check
          %p200 = pneg %p51
        $region34: #{tpu_custom_call.1} parent=31 // pred_check_branch
          %202 = sbr.rel (%p200) target = $region36
        $region35: #{tpu_custom_call.1} parent=31 // pred_region
          %s203 = sand.u32 %s41, 1
          %s204 = scalar_lea.sflag [#allocation3], %s203
          %s205 = sand.u32 %s41, 1
          %s206 = smul.addr %s205, 128
          %s207 = scalar_lea.vmem [#allocation2], %s206
          %s208 = smul.u32 2, %s25
          %210 = vsyncadd %s204, 0
          %s211 = smul.addr %s24, 16
          %s212 = sadd.s32 %s208, %s211
          %s213 = smul.addr %s212, 8
          %s214 = scalar_lea.hbm %s0, %s213
          %s215 = sshll.u32 %s214, 4
          %s216 = int_to_ptr.hbm [resolvable:$true] %s215
          %s217 = sshll.u32 %s207, 4
          %s218 = int_to_ptr.vmem [resolvable:$true] %s217
          %223 = dma.hbm_to_vmem [thread:$0]  %s216, 2048, %s218, %s204, 256, 256, 16
        $region36: #{tpu_custom_call.1} parent=31 // pred_fallthru
          _
      $region32: #{tpu_custom_call.1} parent=5 // pred_fallthru
        _
      %p224 = scmp.le.s32.totalorder 1, %s17
      %p225 = scmp.lt.s32.totalorder %s17, 3
      %p226 = pnand %p224, %p225
      %p227 = pneg %p226
      // Predicated region
      $region37: #{tpu_custom_call.1} parent=5 // pred_check
        _
      $region38: #{tpu_custom_call.1} parent=5 // pred_check_branch
        %229 = sbr.rel (%p226) target = $region40
      $region39: #{tpu_custom_call.1} parent=5 // pred_region
        %s230 = ssub.s32 %s17, 1
        %s231 = sand.u32 %s44, 1
        %s232 = scalar_lea.sflag [#allocation3], %s231
        %s233 = sand.u32 %s44, 1
        %s234 = smul.addr %s233, 128
        %s235 = scalar_lea.vmem [#allocation2], %s234
        // Predicated region
        $region41: #{tpu_custom_call.1} parent=39 // pred_check
          %p236 = pneg %p57
        $region42: #{tpu_custom_call.1} parent=39 // pred_check_branch
          %238 = sbr.rel (%p236) target = $region44
        $region43: #{tpu_custom_call.1} parent=39 // pred_region
          %240 = dma.done %s232, 2048
        $region44: #{tpu_custom_call.1} parent=39 // pred_fallthru
          _
        %s241 = sand.u32 %s44, 1
        %s242 = scalar_lea.sflag [#allocation3], %s241
        %s243 = sand.u32 %s44, 1
        %s244 = smul.addr %s243, 128
        %s245 = scalar_lea.vmem [#allocation2], %s244
        %p246 = pneg %p57
        %p247 = pneg %p54
        %p248 = pneg %p78
        %p249 = pneg %p75
        %p250 = pneg %p99
        %p251 = pneg %p96
        %p252 = pneg %p120
        %p253 = pneg %p117
        %p254 = pneg %p141
        %p255 = pneg %p138
        %p256 = pneg %p169
        %p257 = pneg %p166
        %s258 = sand.u32 %s156, 1
        %s259 = scalar_lea.sflag [#allocation4], %s258
        %s260 = sand.u32 %s156, 1
        %s261 = smul.addr %s260, 8
        %s262 = scalar_lea.vmem [#allocation5], %s261
        %s263 = smul.u32 2, %s27
        %s264 = smul.u32 2, %s27
        %v265 = vld [vmem:[%s1] sm:$0xff]
        %v266 = vld [vmem:[%s235] sm:$0xff]
        %v267 = vld [vmem:[%s235 + $0x8] sm:$0xff]
        %v268 = vld [vmem:[%s235 + $0x10] sm:$0xff]
        %v269 = vld [vmem:[%s235 + $0x18] sm:$0xff]
        %v270 = vld [vmem:[%s235 + $0x20] sm:$0xff]
        %v271 = vld [vmem:[%s235 + $0x28] sm:$0xff]
        %v272 = vld [vmem:[%s235 + $0x30] sm:$0xff]
        %v273 = vld [vmem:[%s235 + $0x38] sm:$0xff]
        %v274 = vld [vmem:[%s235 + $0x40] sm:$0xff]
        %v275 = vld [vmem:[%s235 + $0x48] sm:$0xff]
        %v276 = vld [vmem:[%s235 + $0x50] sm:$0xff]
        %v277 = vld [vmem:[%s235 + $0x58] sm:$0xff]
        %v278 = vld [vmem:[%s235 + $0x60] sm:$0xff]
        %v279 = vld [vmem:[%s235 + $0x68] sm:$0xff]
        %v280 = vld [vmem:[%s235 + $0x70] sm:$0xff]
        %v281 = vld [vmem:[%s235 + $0x78] sm:$0xff]
        %v282 = vld [vmem:[%s2] sm:$0xff]
        %284 = vset.pattern.permute.xlu0 0
        %285 = vperm.xlu0 %284, %v282
        %v286 = vpop.permute.xlu0 %285
        %vm288 = vcmask 523264
        %v290 = vsel %vm288, %v265, 0
        %292 = vmatpush.msra.mxu0 0.0
        %293 = vmatpush.msra.mxu0 0.0
        %294 = vmatpush.msra.mxu0 0.0
        %295 = vmatpush.msra.mxu0 0.0
        %296 = vmatpush.msra.mxu0 0.0
        %297 = vmatpush.msra.mxu0 0.0
        %298 = vmatpush.msra.mxu0 0.0
        %299 = vmatpush.msra.mxu0 0.0
        %300 = vmatpush.msra.mxu0 %v280
        %301 = vmatpush.msra.mxu0 %v278
        %302 = vmatpush.msra.mxu0 %v276
        %303 = vmatpush.msra.mxu0 %v274
        %304 = vmatpush.msra.mxu0 %v272
        %305 = vmatpush.msra.mxu0 %v270
        %306 = vmatpush.msra.mxu0 %v268
        %307 = vmatpush.msra.mxu0 %v266
        %308 = vmatmul.f32.gmra.mxu0 %v290
        %v309 = vpop.f32.mrf.mxu0
        %v310 = vadd.f32 %v286, %v309
        %311 = vdwg.mxu0
        %312 = vmatpush.msra.mxu0 0.0
        %313 = vmatpush.msra.mxu0 0.0
        %314 = vmatpush.msra.mxu0 0.0
        %315 = vmatpush.msra.mxu0 0.0
        %316 = vmatpush.msra.mxu0 0.0
        %317 = vmatpush.msra.mxu0 0.0
        %318 = vmatpush.msra.mxu0 0.0
        %319 = vmatpush.msra.mxu0 0.0
        %320 = vmatpush.msra.mxu0 %v281
        %321 = vmatpush.msra.mxu0 %v279
        %322 = vmatpush.msra.mxu0 %v277
        %323 = vmatpush.msra.mxu0 %v275
        %324 = vmatpush.msra.mxu0 %v273
        %325 = vmatpush.msra.mxu0 %v271
        %326 = vmatpush.msra.mxu0 %v269
        %327 = vmatpush.msra.mxu0 %v267
        %328 = vmatmul.f32.gmra.mxu0 %v290
        %v329 = vpop.f32.mrf.mxu0
        %v330 = vadd.f32 %v286, %v329
        %331 = vdwg.mxu0
        %v332 = vadd.f32 %v310, 1.0
        %v333 = vadd.f32 %v330, 1.0
        %v334 = vmul.f32 %v310, %v332
        %v335 = vmul.f32 %v330, %v333
        %v336 = vld [vmem:[%s3] sm:$0xf]
        %v337 = vld [vmem:[%s4] sm:$0xf]
        %339 = vset.pattern.permute.xlu0 0
        %340 = vperm.xlu0 %339, %v337
        %v341 = vpop.permute.xlu0 %340
        %vm343 = vcmask 64512
        %v345 = vsel %vm343, %v336, 0
        %347 = vmatpush.msra.mxu0 0.0
        %348 = vmatpush.msra.mxu0 0.0
        %349 = vmatpush.msra.mxu0 0.0
        %350 = vmatpush.msra.mxu0 0.0
        %351 = vmatpush.msra.mxu0 0.0
        %352 = vmatpush.msra.mxu0 0.0
        %353 = vmatpush.msra.mxu0 0.0
        %354 = vmatpush.msra.mxu0 0.0
        %355 = vmatpush.msra.mxu0 0.0
        %356 = vmatpush.msra.mxu0 0.0
        %357 = vmatpush.msra.mxu0 0.0
        %358 = vmatpush.msra.mxu0 0.0
        %359 = vmatpush.msra.mxu0 0.0
        %360 = vmatpush.msra.mxu0 0.0
        %361 = vmatpush.msra.mxu0 0.0
        %362 = vmatpush.msra.mxu0 %v334
        %363 = vmatmul.f32.gmra.mxu0 %v345
        %v364 = vpop.f32.mrf.mxu0
        %v365 = vadd.f32 %v341, %v364
        %366 = vdwg.mxu0
        %367 = vmatpush.msra.mxu0 0.0
        %368 = vmatpush.msra.mxu0 0.0
        %369 = vmatpush.msra.mxu0 0.0
        %370 = vmatpush.msra.mxu0 0.0
        %371 = vmatpush.msra.mxu0 0.0
        %372 = vmatpush.msra.mxu0 0.0
        %373 = vmatpush.msra.mxu0 0.0
        %374 = vmatpush.msra.mxu0 0.0
        %375 = vmatpush.msra.mxu0 0.0
        %376 = vmatpush.msra.mxu0 0.0
        %377 = vmatpush.msra.mxu0 0.0
        %378 = vmatpush.msra.mxu0 0.0
        %379 = vmatpush.msra.mxu0 0.0
        %380 = vmatpush.msra.mxu0 0.0
        %381 = vmatpush.msra.mxu0 0.0
        %382 = vmatpush.msra.mxu0 %v335
        %383 = vmatmul.f32.gmra.mxu0 %v345
        %v384 = vpop.f32.mrf.mxu0
        %v385 = vadd.f32 %v341, %v384
        %386 = vdwg.mxu0
        %v389 = vrot.slane %v385, 4
        %vm390 = vcmask 1043456
        %v391 = vsel %vm390, %v365, %v389
        %393 = vst [vmem:[%s262] sm:$0xff] %v391
        %s394 = sand.u32 %s156, 1
        %s395 = scalar_lea.sflag [#allocation4], %s394
        %s396 = sand.u32 %s156, 1
        %s397 = smul.addr %s396, 8
        %s398 = scalar_lea.vmem [#allocation5], %s397
        // Predicated region
        $region45: #{tpu_custom_call.1} parent=39 // pred_check
          %p399 = pneg %p166
        $region46: #{tpu_custom_call.1} parent=39 // pred_check_branch
          %401 = sbr.rel (%p399) target = $region48
        $region47: #{tpu_custom_call.1} parent=39 // pred_region
          %s402 = smul.u32 2, %s27
          %404 = vsyncadd %s395, 0
          %s405 = smul.addr %s26, 2
          %s406 = sadd.s32 %s402, %s405
          %s407 = smul.addr %s406, 4
          %s408 = scalar_lea.hbm %s5, %s407
          %s410 = sshll.u32 %s398, 4
          %s411 = int_to_ptr.vmem [resolvable:$true] %s410
          %s412 = sshll.u32 %s408, 4
          %s413 = int_to_ptr.hbm [resolvable:$true] %s412
          %415 = dma.vmem_to_hbm [thread:$0]  %s411, 128, %s413, %s395
        $region48: #{tpu_custom_call.1} parent=39 // pred_fallthru
          _
      $region40: #{tpu_custom_call.1} parent=5 // pred_fallthru
        _
      %p416 = scmp.le.s32.totalorder 2, %s17
      // Predicated region
      $region49: #{tpu_custom_call.1} parent=5 // pred_check
        %p417 = pneg %p416
      $region50: #{tpu_custom_call.1} parent=5 // pred_check_branch
        %419 = sbr.rel (%p417) target = $region52
      $region51: #{tpu_custom_call.1} parent=5 // pred_region
        %s420 = ssub.s32 %s17, 2
        // Predicated region
        $region53: #{tpu_custom_call.1} parent=51 // pred_check
          %p421 = pneg %p172
        $region54: #{tpu_custom_call.1} parent=51 // pred_check_branch
          %423 = sbr.rel (%p421) target = $region56
        $region55: #{tpu_custom_call.1} parent=51 // pred_region
          %s424 = sand.u32 %s157, 1
          %s425 = scalar_lea.sflag [#allocation4], %s424
          %s426 = sand.u32 %s157, 1
          %s427 = smul.addr %s426, 8
          %s428 = scalar_lea.vmem [#allocation5], %s427
          %430 = dma.done %s425, 128
        $region56: #{tpu_custom_call.1} parent=51 // pred_fallthru
          _
      $region52: #{tpu_custom_call.1} parent=5 // pred_fallthru
        _
    $region6: #{tpu_custom_call.1} parent=1 // loop_footer
      %s21 = sadd.s32 1, %s17
    $region7: #{tpu_custom_call.1} parent=1 // loop_footer_branch
      %16 = sbr.rel target = $region3
    $region8: #{tpu_custom_call.1} parent=1 // loop_exit
      _
    %431 = vsyncpa [#allocation3], 1
    %s432 = scalar_lea.sflag [#allocation3], 1
    %433 = vsyncpa %s432, 1
    %434 = vsyncpa [#allocation4], 1
    %s435 = scalar_lea.sflag [#allocation4], 1
    %436 = vsyncpa %s435, 1

</llo_original>
